<compile_context>
chip_gen: v7x
topology: tpu7x:2x2x1
jax: 0.10.0
libtpu: 0.0.40
codegen_flags: <defaults>
</compile_context>

<pallas_src>
import jax
import jax.numpy as jnp
from jax.experimental import pallas as pl
from jax.experimental.pallas import tpu as pltpu

NOISE_SIZE = 32   # stand-in for opt.noiseSize
H1 = 30
H2 = 10
LANES = 128
BN_EPS = 1e-5


def _disc_noise_kernel(z_ref, w_ref, p_ref, out_ref):
    x = z_ref[...]                                           # (B, NOISE_SIZE) f32

    # Packed, lane-padded bf16 weights (static, sublane-aligned slices of one slab).
    w1 = w_ref[0:NOISE_SIZE, :]                              # (NOISE_SIZE, 128) bf16
    w2 = w_ref[NOISE_SIZE:NOISE_SIZE + LANES, :]             # (128, 128) bf16

    # Packed f32 vector params: one (1,128) row each, zero-padded past real width.
    p = p_ref[...]                                           # (8, 128) f32
    g1, be1 = p[0:1, :], p[1:2, :]
    g2, be2 = p[2:3, :], p[3:4, :]
    w3_row = p[4:5, :]                                       # w3 laid out on lanes
    b3 = p[5:6, 0:1]                                         # (1,1) static slice, no XLU reduce

    def bn_relu(h, g, be):
        # Training-mode BN (biased variance), affine fused to scale/shift. All f32.
        mean = jnp.mean(h, axis=0, keepdims=True)                        # (1,128)
        var = jnp.mean(h * h, axis=0, keepdims=True) - mean * mean       # (1,128)
        var = jnp.maximum(var, 0.0)
        scale = g * jax.lax.rsqrt(var + BN_EPS)                          # (1,128)
        shift = be - mean * scale                                        # (1,128)
        return jnp.maximum(h * scale + shift, 0.0)                       # (B,128)

    # ---- Linear(noiseSize, 30) [bias folded into BN] + BN + ReLU ----
    # bf16 dot inputs, f32 accumulation; BN math stays f32.
    h = jnp.dot(x.astype(jnp.bfloat16), w1, preferred_element_type=jnp.float32)
    h = bn_relu(h, g1, be1)

    # ---- Linear(30, 10) [bias folded into BN] + BN + ReLU ----
    h = jnp.dot(h.astype(jnp.bfloat16), w2, preferred_element_type=jnp.float32)
    h = bn_relu(h, g2, be2)

    # ---- Linear(10, 1) as VPU mul + XLU lane-reduce (f32), then Sigmoid (EUP) ----
    logits = jnp.sum(h * w3_row, axis=-1, keepdims=True) + b3            # (B, 1)
    sig = pl.reciprocal(1.0 + jnp.exp(-logits), approx=True)
    out_ref[...] = sig.astype(out_ref.dtype)


def pack_params(params):
    """Pack parameters into a bf16 weight slab and an f32 (8,128) vector slab."""
    w1 = params["w1"]            # (NOISE_SIZE, H1)
    w2 = params["w2"]            # (H1, H2)
    w3 = params["w3"]            # (H2, 1)
    b3 = params["b3"]            # (1, 1)

    w1_pad = jnp.zeros((NOISE_SIZE, LANES), jnp.float32).at[:, :H1].set(w1)
    w2_pad = jnp.zeros((LANES, LANES), jnp.float32).at[:H1, :H2].set(w2)
    # bf16 slab: halves the DMA / VMEM footprint, native MXU rate on v6e/v7x.
    w_slab = jnp.concatenate([w1_pad, w2_pad], axis=0).astype(jnp.bfloat16)

    def row(v, n):
        return jnp.zeros((1, LANES), jnp.float32).at[:, :n].set(
            jnp.asarray(v, jnp.float32).reshape(1, n))

    p_slab = jnp.concatenate(
        [
            row(params["g1"], H1),
            row(params["be1"], H1),
            row(params["g2"], H2),
            row(params["be2"], H2),
            row(w3.reshape(1, H2), H2),      # w3 as a lane row (stays f32)
            row(b3.reshape(1, 1), 1),        # b3 at lane 0
            jnp.zeros((2, LANES), jnp.float32),  # pad to 8 sublanes
        ],
        axis=0,
    )                                                        # (8, 128) f32
    return w_slab, p_slab


def discriminator_noise_forward(z, w_slab, p_slab):
    """z: (B, NOISE_SIZE) float32. Returns (B, 1) float32 validity."""
    B = z.shape[0]

    def full_spec(a):
        # Whole array as a single VMEM block (tiny problem: everything fits).
        return pl.BlockSpec(a.shape, lambda: (0,) * a.ndim)

    flops = 2 * B * (NOISE_SIZE * H1 + H1 * H2 + H2)
    bytes_accessed = (z.size * z.dtype.itemsize
                      + w_slab.size * w_slab.dtype.itemsize
                      + p_slab.size * p_slab.dtype.itemsize
                      + B * 4)
    transcendentals = 3 * B + H1 + H2   # exp + approx-recip per row, rsqrt per feature

    return pl.pallas_call(
        _disc_noise_kernel,
        out_shape=jax.ShapeDtypeStruct((B, 1), jnp.float32),
        grid=(),
        in_specs=[full_spec(z), full_spec(w_slab), full_spec(p_slab)],
        out_specs=pl.BlockSpec((B, 1), lambda: (0, 0)),
        cost_estimate=pl.CostEstimate(flops=flops,
                                      transcendentals=transcendentals,
                                      bytes_accessed=bytes_accessed),
    )(z, w_slab, p_slab)


def init_params(key):
    """Deterministic init mirroring nn.Linear / nn.BatchNorm1d parameter shapes.

    b1/b2 are created (like PyTorch) and used by the reference, but the kernel
    omits them: BN's mean subtraction cancels them exactly.
    """
    ks = jax.random.split(key, 6)

    def linear(kw, kb, fan_in, fan_out):
        bound = 1.0 / jnp.sqrt(float(fan_in))
        w = jax.random.uniform(kw, (fan_in, fan_out), jnp.float32, -bound, bound)
        b = jax.random.uniform(kb, (1, fan_out), jnp.float32, -bound, bound)
        return w, b

    w1, b1 = linear(ks[0], ks[1], NOISE_SIZE, H1)
    w2, b2 = linear(ks[2], ks[3], H1, H2)
    w3, b3 = linear(ks[4], ks[5], H2, 1)
    return {
        "w1": w1, "b1": b1,
        "g1": jnp.ones((1, H1), jnp.float32), "be1": jnp.zeros((1, H1), jnp.float32),
        "w2": w2, "b2": b2,
        "g2": jnp.ones((1, H2), jnp.float32), "be2": jnp.zeros((1, H2), jnp.float32),
        "w3": w3, "b3": b3,
    }


def _reference_forward(z, p):
    """Plain-JAX f32 reference of the PyTorch forward (training-mode BN, with biases)."""
    def bn(h, g, b):
        m = jnp.mean(h, axis=0, keepdims=True)
        v = jnp.mean((h - m) ** 2, axis=0, keepdims=True)
        return (h - m) / jnp.sqrt(v + BN_EPS) * g + b

    h = z @ p["w1"] + p["b1"]
    h = jnp.maximum(bn(h, p["g1"], p["be1"]), 0.0)
    h = h @ p["w2"] + p["b2"]
    h = jnp.maximum(bn(h, p["g2"], p["be2"]), 0.0)
    return jax.nn.sigmoid(h @ p["w3"] + p["b3"])


# TODO(synk): training-mode BatchNorm1d also updates running_mean/running_var
# buffers; the kernel only computes the normalized forward output.

if __name__ == "__main__":
    key = jax.random.PRNGKey(0)
    k_param, k_z = jax.random.split(key)

    params = init_params(k_param)
    w_slab, p_slab = pack_params(params)

    B = 8
    z = jax.random.normal(k_z, (B, NOISE_SIZE), jnp.float32)

    out = discriminator_noise_forward(z, w_slab, p_slab)
    out = jax.block_until_ready(out)

    ref = _reference_forward(z, params)
    assert out.shape == (B, 1)
    # Tolerance covers the bf16 weight/activation inputs to the two MXU dots and
    # the approx-EUP reciprocal in the sigmoid (reference is pure f32).
    assert jnp.allclose(out, ref, atol=2e-2, rtol=2e-2), "mismatch vs reference"

    print("KERNEL_OK")
</pallas_src>

<mosaic_0001>
module attributes {stable_mosaic.version = 11 : i64} {
  func.func @_disc_noise_kernel(%arg0: memref<8x32xf32, #tpu.memory_space<vmem>>, %arg1: memref<160x128xbf16, #tpu.memory_space<vmem>>, %arg2: memref<8x128xf32, #tpu.memory_space<vmem>>, %arg3: memref<8x1xf32, #tpu.memory_space<vmem>>) attributes {dimension_semantics = [], scalar_prefetch = 0 : i64, scratch_operands = 0 : i64, tpu.core_type = #tpu.core_type<tc>} {
    %c0 = arith.constant 0 : index
    %c0_0 = arith.constant 0 : index
    %0 = vector.load %arg0[%c0, %c0_0] : memref<8x32xf32, #tpu.memory_space<vmem>>, vector<8x32xf32>
    %c0_1 = arith.constant 0 : index
    %c0_2 = arith.constant 0 : index
    %1 = vector.load %arg1[%c0_1, %c0_2] : memref<160x128xbf16, #tpu.memory_space<vmem>>, vector<32x128xbf16>
    %c32 = arith.constant 32 : index
    %c0_3 = arith.constant 0 : index
    %2 = vector.load %arg1[%c32, %c0_3] : memref<160x128xbf16, #tpu.memory_space<vmem>>, vector<128x128xbf16>
    %c0_4 = arith.constant 0 : index
    %c0_5 = arith.constant 0 : index
    %3 = vector.load %arg2[%c0_4, %c0_5] : memref<8x128xf32, #tpu.memory_space<vmem>>, vector<8x128xf32>
    %4 = vector.extract_strided_slice %3 {offsets = [0, 0], sizes = [1, 128], strides = [1, 1]} : vector<8x128xf32> to vector<1x128xf32>
    %5 = vector.extract_strided_slice %3 {offsets = [1, 0], sizes = [1, 128], strides = [1, 1]} : vector<8x128xf32> to vector<1x128xf32>
    %6 = vector.extract_strided_slice %3 {offsets = [2, 0], sizes = [1, 128], strides = [1, 1]} : vector<8x128xf32> to vector<1x128xf32>
    %7 = vector.extract_strided_slice %3 {offsets = [3, 0], sizes = [1, 128], strides = [1, 1]} : vector<8x128xf32> to vector<1x128xf32>
    %8 = vector.extract_strided_slice %3 {offsets = [4, 0], sizes = [1, 128], strides = [1, 1]} : vector<8x128xf32> to vector<1x128xf32>
    %9 = vector.extract_strided_slice %3 {offsets = [5, 0], sizes = [1, 1], strides = [1, 1]} : vector<8x128xf32> to vector<1x1xf32>
    %10 = arith.truncf %0 : vector<8x32xf32> to vector<8x32xbf16>
    %cst = arith.constant dense<0.000000e+00> : vector<8x128xf32>
    %11 = tpu.matmul %10, %1, %cst {dimension_numbers = #tpu.dot_dimension_numbers<[1], [0], [0], [1], [0, 0, 1, 1], [], []>} : vector<8x32xbf16>, vector<32x128xbf16>, vector<8x128xf32> -> vector<8x128xf32>
    %cst_6 = arith.constant dense<0.000000e+00> : vector<128xf32>
    %12 = vector.multi_reduction <add>, %11, %cst_6 [0] : vector<8x128xf32> to vector<128xf32>
    %13 = vector.shape_cast %12 : vector<128xf32> to vector<1x128xf32>
    %cst_7 = arith.constant 8.000000e+00 : f32
    %14 = vector.broadcast %cst_7 : f32 to vector<1x128xf32>
    %15 = arith.divf %13, %14 : vector<1x128xf32>
    %16 = arith.mulf %11, %11 : vector<8x128xf32>
    %cst_8 = arith.constant dense<0.000000e+00> : vector<128xf32>
    %17 = vector.multi_reduction <add>, %16, %cst_8 [0] : vector<8x128xf32> to vector<128xf32>
    %18 = vector.shape_cast %17 : vector<128xf32> to vector<1x128xf32>
    %cst_9 = arith.constant 8.000000e+00 : f32
    %19 = vector.broadcast %cst_9 : f32 to vector<1x128xf32>
    %20 = arith.divf %18, %19 : vector<1x128xf32>
    %21 = arith.mulf %15, %15 : vector<1x128xf32>
    %22 = arith.subf %20, %21 : vector<1x128xf32>
    %cst_10 = arith.constant 0.000000e+00 : f32
    %23 = vector.broadcast %cst_10 : f32 to vector<1x128xf32>
    %24 = arith.maximumf %22, %23 : vector<1x128xf32>
    %cst_11 = arith.constant 9.99999974E-6 : f32
    %25 = vector.broadcast %cst_11 : f32 to vector<1x128xf32>
    %26 = arith.addf %24, %25 : vector<1x128xf32>
    %27 = math.rsqrt %26 : vector<1x128xf32>
    %28 = arith.mulf %4, %27 : vector<1x128xf32>
    %29 = arith.mulf %15, %28 : vector<1x128xf32>
    %30 = arith.subf %5, %29 : vector<1x128xf32>
    %31 = vector.broadcast %28 : vector<1x128xf32> to vector<8x128xf32>
    %32 = arith.mulf %11, %31 : vector<8x128xf32>
    %33 = vector.broadcast %30 : vector<1x128xf32> to vector<8x128xf32>
    %34 = arith.addf %32, %33 : vector<8x128xf32>
    %cst_12 = arith.constant 0.000000e+00 : f32
    %35 = vector.broadcast %cst_12 : f32 to vector<8x128xf32>
    %36 = arith.maximumf %34, %35 : vector<8x128xf32>
    %37 = arith.truncf %36 : vector<8x128xf32> to vector<8x128xbf16>
    %cst_13 = arith.constant dense<0.000000e+00> : vector<8x128xf32>
    %38 = tpu.matmul %37, %2, %cst_13 {dimension_numbers = #tpu.dot_dimension_numbers<[1], [0], [0], [1], [0, 0, 1, 1], [], []>} : vector<8x128xbf16>, vector<128x128xbf16>, vector<8x128xf32> -> vector<8x128xf32>
    %cst_14 = arith.constant dense<0.000000e+00> : vector<128xf32>
    %39 = vector.multi_reduction <add>, %38, %cst_14 [0] : vector<8x128xf32> to vector<128xf32>
    %40 = vector.shape_cast %39 : vector<128xf32> to vector<1x128xf32>
    %cst_15 = arith.constant 8.000000e+00 : f32
    %41 = vector.broadcast %cst_15 : f32 to vector<1x128xf32>
    %42 = arith.divf %40, %41 : vector<1x128xf32>
    %43 = arith.mulf %38, %38 : vector<8x128xf32>
    %cst_16 = arith.constant dense<0.000000e+00> : vector<128xf32>
    %44 = vector.multi_reduction <add>, %43, %cst_16 [0] : vector<8x128xf32> to vector<128xf32>
    %45 = vector.shape_cast %44 : vector<128xf32> to vector<1x128xf32>
    %cst_17 = arith.constant 8.000000e+00 : f32
    %46 = vector.broadcast %cst_17 : f32 to vector<1x128xf32>
    %47 = arith.divf %45, %46 : vector<1x128xf32>
    %48 = arith.mulf %42, %42 : vector<1x128xf32>
    %49 = arith.subf %47, %48 : vector<1x128xf32>
    %cst_18 = arith.constant 0.000000e+00 : f32
    %50 = vector.broadcast %cst_18 : f32 to vector<1x128xf32>
    %51 = arith.maximumf %49, %50 : vector<1x128xf32>
    %cst_19 = arith.constant 9.99999974E-6 : f32
    %52 = vector.broadcast %cst_19 : f32 to vector<1x128xf32>
    %53 = arith.addf %51, %52 : vector<1x128xf32>
    %54 = math.rsqrt %53 : vector<1x128xf32>
    %55 = arith.mulf %6, %54 : vector<1x128xf32>
    %56 = arith.mulf %42, %55 : vector<1x128xf32>
    %57 = arith.subf %7, %56 : vector<1x128xf32>
    %58 = vector.broadcast %55 : vector<1x128xf32> to vector<8x128xf32>
    %59 = arith.mulf %38, %58 : vector<8x128xf32>
    %60 = vector.broadcast %57 : vector<1x128xf32> to vector<8x128xf32>
    %61 = arith.addf %59, %60 : vector<8x128xf32>
    %cst_20 = arith.constant 0.000000e+00 : f32
    %62 = vector.broadcast %cst_20 : f32 to vector<8x128xf32>
    %63 = arith.maximumf %61, %62 : vector<8x128xf32>
    %64 = vector.broadcast %8 : vector<1x128xf32> to vector<8x128xf32>
    %65 = arith.mulf %63, %64 : vector<8x128xf32>
    %cst_21 = arith.constant dense<0.000000e+00> : vector<8xf32>
    %66 = vector.multi_reduction <add>, %65, %cst_21 [1] : vector<8x128xf32> to vector<8xf32>
    %67 = vector.shape_cast %66 : vector<8xf32> to vector<8x1xf32>
    %68 = vector.broadcast %9 : vector<1x1xf32> to vector<8x1xf32>
    %69 = arith.addf %67, %68 : vector<8x1xf32>
    %cst_22 = arith.constant 0.000000e+00 : f32
    %70 = vector.broadcast %cst_22 : f32 to vector<8x1xf32>
    %71 = arith.subf %70, %69 : vector<8x1xf32>
    %72 = math.exp %71 : vector<8x1xf32>
    %cst_23 = arith.constant 1.000000e+00 : f32
    %73 = vector.broadcast %cst_23 : f32 to vector<8x1xf32>
    %74 = arith.addf %73, %72 : vector<8x1xf32>
    %75 = tpu.reciprocal %74 {approx = true} : vector<8x1xf32> -> vector<8x1xf32>
    %c0_24 = arith.constant 0 : index
    %c0_25 = arith.constant 0 : index
    %76 = vector.load %arg3[%c0_24, %c0_25] : memref<8x1xf32, #tpu.memory_space<vmem>>, vector<8x1xf32>
    tpu.vector_store %arg3[%c0_24, %c0_25], %75 {strides = array<i32>} : memref<8x1xf32, #tpu.memory_space<vmem>>, vector<8x1xf32>,
    return
  }
}

</mosaic_0001>

<llo_original>
// kernel: tpu_custom_call.1
$region0: #{tpu_custom_call.1}
  #allocation0 [shape = 'u32[]', space=smem, size = 0x4, offset = 0x4, fixed_abs, tag = 'smem constant byte address 0x4 - core index']
  #allocation1 [shape = 'u32[144,128]{1,0:T(1,128)}', space=vmem, size = 0x12000, scoped, tag = 'internal scratch']
  %s0 = inlined_call_operand.hbm [shape: f32[8,32], index: 0, kind: input, shape index: {}]
  %s1 = inlined_call_operand.hbm [shape: bf16[160,128], index: 1, kind: input, shape index: {}]
  %s2 = inlined_call_operand.hbm [shape: f32[8,128], index: 2, kind: input, shape index: {}]
  %s3 = inlined_call_operand.vmem [shape: f32[8,1], index: 3, kind: output, shape index: {}]
  %s4 = sld [smem:[#allocation0]]
  $region34: #{tpu_custom_call.1} parent=0
    _
  %s6 = ssub.s32 1, %s4
  %s7 = scalar_select 0, %s6, %s4
  $region1: #{tpu_custom_call.1} parent=0
    #allocation2 [shape = 'u8[4096]{0}', space=vmem, size = 0x1000, scoped, tag = 'input window, operand 0, single buffered']
    #allocation3 [shape = 's32[1]{0}', space=sflag, size = 0x4, scoped, tag = 'scoped memory for tpu_custom_call.1']
    #allocation4 [shape = 'u8[40960]{0}', space=vmem, size = 0xa000, scoped, tag = 'input window, operand 1, single buffered']
    #allocation5 [shape = 's32[1]{0}', space=sflag, size = 0x4, scoped, tag = 'scoped memory for tpu_custom_call.1']
    #allocation6 [shape = 'u8[4096]{0}', space=vmem, size = 0x1000, scoped, tag = 'input window, operand 2, single buffered']
    %8 = vsyncpa [#allocation3], 0
    %9 = vsyncpa [#allocation5], 0
    // Predicated region
    $region2: #{tpu_custom_call.1} parent=1 // pred_check
      _
    $region3: #{tpu_custom_call.1} parent=1 // pred_check_branch
      %11 = sbr.rel (0) target = $region5
    $region4: #{tpu_custom_call.1} parent=1 // pred_region
      %s13 = ssub.s32 128, 128
      %14 = vsyncadd [#allocation3], %s13
      %s16 = sshll.u32 [#allocation2], 4
      %s17 = int_to_ptr.vmem [resolvable:$true] %s16
      %19 = dma.hbm_to_vmem [thread:$0]  %s0, 128, %s17, [#allocation3]
    $region5: #{tpu_custom_call.1} parent=1 // pred_fallthru
      _
    // Predicated region
    $region6: #{tpu_custom_call.1} parent=1 // pred_check
      _
    $region7: #{tpu_custom_call.1} parent=1 // pred_check_branch
      %21 = sbr.rel (0) target = $region9
    $region8: #{tpu_custom_call.1} parent=1 // pred_region
      %s23 = ssub.s32 1280, 1280
      %24 = vsyncadd [#allocation5], %s23
      %s25 = sshll.u32 [#allocation4], 4
      %s26 = int_to_ptr.vmem [resolvable:$true] %s25
      %31 = dma.hbm_to_vmem [thread:$0]  %s1, 1280, %s26, [#allocation5], 64, 64, 4
    $region9: #{tpu_custom_call.1} parent=1 // pred_fallthru
      _
    // Predicated region
    $region10: #{tpu_custom_call.1} parent=1 // pred_check
      _
    $region11: #{tpu_custom_call.1} parent=1 // pred_check_branch
      %33 = sbr.rel (0) target = $region13
    $region12: #{tpu_custom_call.1} parent=1 // pred_region
      %s35 = ssub.s32 128, 128
      %36 = vsyncadd [#allocation5], %s35
      %s38 = sshll.u32 [#allocation6], 4
      %s39 = int_to_ptr.vmem [resolvable:$true] %s38
      %41 = dma.hbm_to_vmem [thread:$0]  %s2, 128, %s39, [#allocation5]
    $region13: #{tpu_custom_call.1} parent=1 // pred_fallthru
      _
    // Predicated region
    $region14: #{tpu_custom_call.1} parent=1 // pred_check
      _
    $region15: #{tpu_custom_call.1} parent=1 // pred_check_branch
      %43 = sbr.rel (0) target = $region17
    $region16: #{tpu_custom_call.1} parent=1 // pred_region
      %44 = dma.done [#allocation3], 128
    $region17: #{tpu_custom_call.1} parent=1 // pred_fallthru
      _
    // Predicated region
    $region18: #{tpu_custom_call.1} parent=1 // pred_check
      _
    $region19: #{tpu_custom_call.1} parent=1 // pred_check_branch
      %46 = sbr.rel (0) target = $region21
    $region20: #{tpu_custom_call.1} parent=1 // pred_region
      %47 = dma.done [#allocation5], 1280
    $region21: #{tpu_custom_call.1} parent=1 // pred_fallthru
      _
    // Predicated region
    $region22: #{tpu_custom_call.1} parent=1 // pred_check
      _
    $region23: #{tpu_custom_call.1} parent=1 // pred_check_branch
      %49 = sbr.rel (0) target = $region25
    $region24: #{tpu_custom_call.1} parent=1 // pred_region
      %50 = dma.done [#allocation5], 128
    $region25: #{tpu_custom_call.1} parent=1 // pred_fallthru
      _
    %v52 = vld [vmem:[#allocation2] sm:$0xff]
    %v53 = vld [vmem:[#allocation4] sm:$0xf]
    %v54 = vld [vmem:[#allocation4 + $0x4] sm:$0xf]
    %v55 = vld [vmem:[#allocation4 + $0x8] sm:$0xf]
    %v56 = vld [vmem:[#allocation4 + $0xc] sm:$0xf]
    %v57 = vld [vmem:[#allocation4 + $0x10] sm:$0xf]
    %v58 = vld [vmem:[#allocation4 + $0x14] sm:$0xf]
    %v59 = vld [vmem:[#allocation4 + $0x18] sm:$0xf]
    %v60 = vld [vmem:[#allocation4 + $0x1c] sm:$0xf]
    %v61 = vld [vmem:[#allocation4 + $0x20] sm:$0xf]
    %v62 = vld [vmem:[#allocation4 + $0x24] sm:$0xf]
    %v63 = vld [vmem:[#allocation4 + $0x28] sm:$0xf]
    %v64 = vld [vmem:[#allocation4 + $0x2c] sm:$0xf]
    %v65 = vld [vmem:[#allocation4 + $0x30] sm:$0xf]
    %v66 = vld [vmem:[#allocation4 + $0x34] sm:$0xf]
    %v67 = vld [vmem:[#allocation4 + $0x38] sm:$0xf]
    %v68 = vld [vmem:[#allocation4 + $0x3c] sm:$0xf]
    %v69 = vld [vmem:[#allocation4 + $0x40] sm:$0xf]
    %v70 = vld [vmem:[#allocation4 + $0x44] sm:$0xf]
    %v71 = vld [vmem:[#allocation4 + $0x48] sm:$0xf]
    %v72 = vld [vmem:[#allocation4 + $0x4c] sm:$0xf]
    %v73 = vld [vmem:[#allocation6] sm:$0xff]
    %v74 = vpack.c.bf16 %v52, %v52
    %v79 = vunpack.c.l.b16 %v53
    %v80 = vunpack.c.l.b16 %v54
    %v81 = vunpack.c.l.b16 %v55
    %v82 = vunpack.c.l.b16 %v56
    %v83 = vpack.c.b16 %v80, %v79
    %v84 = vpack.c.b16 %v82, %v81
    %vm87 = vcmask 261120
    %v89 = vsel %vm87, %v74, 0
    %91 = vmatprep.subr.bf16.mxu0 0
    %92 = vmatpush1.bf16.msra.mxu0 %v83
    %93 = vmatprep.subr.bf16.mxu0 0
    %94 = vmatpush1.bf16.msra.mxu0 %v84
    %95 = vmatprep.subr.bf16.mxu0 0
    %96 = vmatpush1.bf16.msra.mxu0 0
    %97 = vmatprep.subr.bf16.mxu0 0
    %98 = vmatpush1.bf16.msra.mxu0 0
    %99 = vmatprep.subr.bf16.mxu0 0
    %100 = vmatpush1.bf16.msra.mxu0 0
    %101 = vmatprep.subr.bf16.mxu0 0
    %102 = vmatpush1.bf16.msra.mxu0 0
    %103 = vmatprep.subr.bf16.mxu0 0
    %104 = vmatpush1.bf16.msra.mxu0 0
    %105 = vmatprep.subr.bf16.mxu0 0
    %106 = vmatpush1.bf16.msra.mxu0 0
    %107 = vmatprep.subr.bf16.mxu0 0
    %108 = vmatpush1.bf16.msra.mxu0 0
    %109 = vmatprep.subr.bf16.mxu0 0
    %110 = vmatpush1.bf16.msra.mxu0 0
    %111 = vmatprep.subr.bf16.mxu0 0
    %112 = vmatpush1.bf16.msra.mxu0 0
    %113 = vmatprep.subr.bf16.mxu0 0
    %114 = vmatpush1.bf16.msra.mxu0 0
    %115 = vmatprep.subr.bf16.mxu0 0
    %116 = vmatpush1.bf16.msra.mxu0 0
    %117 = vmatprep.subr.bf16.mxu0 0
    %118 = vmatpush1.bf16.msra.mxu0 0
    %119 = vmatprep.subr.bf16.mxu0 0
    %120 = vmatpush1.bf16.msra.mxu0 0
    %121 = vmatprep.subr.bf16.mxu0 0
    %122 = vmatpush1.bf16.msra.mxu0 0
    %123 = vmatprep.mubr.bf16.mxu0 0
    %124 = vmatmul.mubr.bf16.gmra.mrb[0].mxu0 %v89
    %v125 = vpop.f32.mrb[0].mxu0
    %v126 = vadd.f32 0.0, %v125
    %v127 = vpop.f32.mrb[0].mxu0
    %v128 = vpop.f32.mrb[0].mxu0
    %v129 = vpop.f32.mrb[0].mxu0
    %130 = vdwg.mxu0
    %v131 = vrot.slane %v126, 4
    %v132 = vadd.f32 %v126, %v131
    %v133 = vrot.slane %v132, 2
    %v134 = vadd.f32 %v132, %v133
    %v135 = vrot.slane %v134, 1
    %v136 = vadd.f32 %v134, %v135
    %v137 = vrcp.pop 8.0
    %v138 = vmul.f32 %v136, %v137
    %v139 = vmul.f32 %v126, %v126
    %v140 = vrot.slane %v139, 4
    %v141 = vadd.f32 %v139, %v140
    %v142 = vrot.slane %v141, 2
    %v143 = vadd.f32 %v141, %v142
    %v144 = vrot.slane %v143, 1
    %v145 = vadd.f32 %v143, %v144
    %v146 = vmul.f32 %v145, %v137
    %v147 = vmul.f32 %v138, %v138
    %v148 = vsub.f32 %v146, %v147
    %v149 = vmax.f32 %v148, 0.0
    %v150 = vadd.f32 %v149, 1e-05
    %v151 = vrsqrt.pop %v150
    %v152 = vmul.f32 %v73, %v151
    %v153 = vmul.f32 %v138, %v152
    %v155 = vrot.slane %v153, 7
    %v157 = vsub.f32 %v73, %v155
    %v158 = vlaneseq
    %v159 = vshrl.u32 %v158, 7
    %v160 = vsub.s32 0, %v159
    %v161 = vrot.slane %v152, %v160
    %v162 = vmul.f32 %v126, %v161
    %v163 = vlaneseq
    %v164 = vshrl.u32 %v163, 7
    %v165 = vsub.s32 1, %v164
    %v166 = vrot.slane %v157, %v165
    %v167 = vadd.f32 %v162, %v166
    %v168 = vmax.f32 %v167, 0.0
    %v169 = vpack.c.bf16 %v168, %v168
    %v186 = vunpack.c.l.b16 %v57
    %v187 = vunpack.c.l.b16 %v58
    %v188 = vunpack.c.l.b16 %v59
    %v189 = vunpack.c.l.b16 %v60
    %v190 = vunpack.c.l.b16 %v61
    %v191 = vunpack.c.l.b16 %v62
    %v192 = vunpack.c.l.b16 %v63
    %v193 = vunpack.c.l.b16 %v64
    %v194 = vunpack.c.l.b16 %v65
    %v195 = vunpack.c.l.b16 %v66
    %v196 = vunpack.c.l.b16 %v67
    %v197 = vunpack.c.l.b16 %v68
    %v198 = vunpack.c.l.b16 %v69
    %v199 = vunpack.c.l.b16 %v70
    %v200 = vunpack.c.l.b16 %v71
    %v201 = vunpack.c.l.b16 %v72
    %v202 = vpack.c.b16 %v187, %v186
    %v203 = vpack.c.b16 %v189, %v188
    %v204 = vpack.c.b16 %v191, %v190
    %v205 = vpack.c.b16 %v193, %v192
    %v206 = vpack.c.b16 %v195, %v194
    %v207 = vpack.c.b16 %v197, %v196
    %v208 = vpack.c.b16 %v199, %v198
    %v209 = vpack.c.b16 %v201, %v200
    %218 = vmatprep.subr.bf16.mxu0 0
    %219 = vmatpush1.bf16.msra.mxu0 %v202
    %220 = vmatprep.subr.bf16.mxu0 0
    %221 = vmatpush1.bf16.msra.mxu0 %v203
    %222 = vmatprep.subr.bf16.mxu0 0
    %223 = vmatpush1.bf16.msra.mxu0 %v204
    %224 = vmatprep.subr.bf16.mxu0 0
    %225 = vmatpush1.bf16.msra.mxu0 %v205
    %226 = vmatprep.subr.bf16.mxu0 0
    %227 = vmatpush1.bf16.msra.mxu0 %v206
    %228 = vmatprep.subr.bf16.mxu0 0
    %229 = vmatpush1.bf16.msra.mxu0 %v207
    %230 = vmatprep.subr.bf16.mxu0 0
    %231 = vmatpush1.bf16.msra.mxu0 %v208
    %232 = vmatprep.subr.bf16.mxu0 0
    %233 = vmatpush1.bf16.msra.mxu0 %v209
    %234 = vmatprep.subr.bf16.mxu0 0
    %235 = vmatpush1.bf16.msra.mxu0 0
    %236 = vmatprep.subr.bf16.mxu0 0
    %237 = vmatpush1.bf16.msra.mxu0 0
    %238 = vmatprep.subr.bf16.mxu0 0
    %239 = vmatpush1.bf16.msra.mxu0 0
    %240 = vmatprep.subr.bf16.mxu0 0
    %241 = vmatpush1.bf16.msra.mxu0 0
    %242 = vmatprep.subr.bf16.mxu0 0
    %243 = vmatpush1.bf16.msra.mxu0 0
    %244 = vmatprep.subr.bf16.mxu0 0
    %245 = vmatpush1.bf16.msra.mxu0 0
    %246 = vmatprep.subr.bf16.mxu0 0
    %247 = vmatpush1.bf16.msra.mxu0 0
    %248 = vmatprep.subr.bf16.mxu0 0
    %249 = vmatpush1.bf16.msra.mxu0 0
    %250 = vmatprep.mubr.bf16.mxu0 0
    %251 = vmatmul.mubr.bf16.gmra.mrb[0].mxu0 %v169
    %v252 = vpop.f32.mrb[0].mxu0
    %v253 = vadd.f32 0.0, %v252
    %v254 = vpop.f32.mrb[0].mxu0
    %v255 = vpop.f32.mrb[0].mxu0
    %v256 = vpop.f32.mrb[0].mxu0
    %257 = vdwg.mxu0
    %v258 = vrot.slane %v253, 4
    %v259 = vadd.f32 %v253, %v258
    %v260 = vrot.slane %v259, 2
    %v261 = vadd.f32 %v259, %v260
    %v262 = vrot.slane %v261, 1
    %v263 = vadd.f32 %v261, %v262
    %v264 = vmul.f32 %v263, %v137
    %v265 = vmul.f32 %v253, %v253
    %v266 = vrot.slane %v265, 4
    %v267 = vadd.f32 %v265, %v266
    %v268 = vrot.slane %v267, 2
    %v269 = vadd.f32 %v267, %v268
    %v270 = vrot.slane %v269, 1
    %v271 = vadd.f32 %v269, %v270
    %v272 = vmul.f32 %v271, %v137
    %v273 = vmul.f32 %v264, %v264
    %v274 = vsub.f32 %v272, %v273
    %v275 = vmax.f32 %v274, 0.0
    %v276 = vadd.f32 %v275, 1e-05
    %v277 = vrsqrt.pop %v276
    %v278 = vmul.f32 %v73, %v277
    %v279 = vmul.f32 %v264, %v278
    %v281 = vrot.slane %v279, 7
    %v283 = vsub.f32 %v73, %v281
    %v284 = vlaneseq
    %v285 = vshrl.u32 %v284, 7
    %v286 = vsub.s32 2, %v285
    %v287 = vrot.slane %v278, %v286
    %v288 = vmul.f32 %v253, %v287
    %v289 = vlaneseq
    %v290 = vshrl.u32 %v289, 7
    %v291 = vsub.s32 3, %v290
    %v292 = vrot.slane %v283, %v291
    %v293 = vadd.f32 %v288, %v292
    %v294 = vmax.f32 %v293, 0.0
    %v295 = vlaneseq
    %v296 = vshrl.u32 %v295, 7
    %v297 = vsub.s32 4, %v296
    %v298 = vrot.slane %v73, %v297
    %v299 = vmul.f32 %v294, %v298
    %300 = vadd.xlane.f32.xlu0 %v299
    %v301 = vpop.xlane.xlu0 %300
    %v302 = vlaneseq
    %v303 = vshrl.u32 %v302, 7
    %v304 = vsub.s32 5, %v303
    %v305 = vrot.slane %v73, %v304
    %v306 = vadd.f32 %v301, %v305
    %v307 = vsub.f32 0.0, %v306
    %v308 = vmul.f32 %v307, 1.442695
    %v309 = vpow.pop %v308
    %v310 = vadd.f32 %v309, 1.0
    %v311 = vrcp.pop %v310
    %vm312 = vcmask 7168
    %313 = vst.msk [vmem:[%s3] sm:$0xff] %vm312, %v311
    // Predicated region
    $region26: #{tpu_custom_call.1} parent=1 // pred_check
      _
    $region27: #{tpu_custom_call.1} parent=1 // pred_check_branch
      %315 = sbr.rel (0) target = $region29
    $region28: #{tpu_custom_call.1} parent=1 // pred_region
      _
    $region29: #{tpu_custom_call.1} parent=1 // pred_fallthru
      _
    // Predicated region
    $region30: #{tpu_custom_call.1} parent=1 // pred_check
      _
    $region31: #{tpu_custom_call.1} parent=1 // pred_check_branch
      %317 = sbr.rel (0) target = $region33
    $region32: #{tpu_custom_call.1} parent=1 // pred_region
      _
    $region33: #{tpu_custom_call.1} parent=1 // pred_fallthru
      _
    %318 = vsyncpa [#allocation3], 1
    %319 = vsyncpa [#allocation5], 1

</llo_original>
